<compile_context>
chip_gen: v7x
topology: tpu7x:2x2x1
jax: 0.10.0
libtpu: 0.0.40
codegen_flags: <defaults>
</compile_context>

<pallas_src>
import jax
import jax.numpy as jnp
from jax.experimental import pallas as pl
from jax.experimental.pallas import tpu as pltpu


def _tpu_hw_info():
    """(physical VMEM bytes per core, TensorCores per chip), with fallbacks."""
    vmem_phys = None
    try:
        vmem_phys = int(pltpu.get_tpu_info().vmem_capacity_bytes)
    except Exception:
        pass
    kind = ""
    try:
        kind = jax.devices()[0].device_kind.lower()
    except Exception:
        pass
    is_v7x = "7" in kind
    if vmem_phys is None:
        vmem_phys = (64 if is_v7x else 128) * 1024 * 1024
    # 2 TensorCores per chip on v7x (and megacore chips); 1 on v5e/v6e.
    n_tc = 2 if (is_v7x or "v4" in kind or "v5p" in kind) else 1
    return vmem_phys, n_tc


def _pick_tile_b(B, D, itemsize, vmem_phys, ns):
    """Batch-tile size sized by bytes-per-grid-step and a gen-aware VMEM budget."""
    align = max(8, 32 // max(itemsize, 1))        # 8 f32, 16 bf16, 32 int8/fp8
    # Target ~8 MiB of input traffic per grid step (4 streams) to amortize the
    # ~0.35 us fixed per-step pipeline overhead on this HBM-bound kernel.
    target_step_bytes = 8 * 1024 * 1024
    tb_target = target_step_bytes // max(4 * D * itemsize, 1)
    # VMEM budget: ~45% of physical capacity, charging the double-buffered
    # input blocks plus ~6 live f32 (TB, D) temporaries in the kernel body.
    vmem_budget = int(0.45 * vmem_phys)
    per_row = 4 * 2 * D * itemsize + 6 * D * 4
    tb_vmem = vmem_budget // max(per_row, 1)
    tb = min(tb_target, tb_vmem)
    tb = max(align, (tb // align) * align)
    if tb >= B:
        return B                                   # full-batch block is legal
    # Prefer a TB whose tile count divides evenly across shards so the clamped
    # index_map never re-reads (re-DMAs) a tile.
    if ns > 1:
        t = tb
        lo = max(align, ((tb * 3) // 4 // align) * align)
        while t >= lo:
            if pl.cdiv(B, t) % ns == 0:
                return t
            t -= align
    return tb


def make_quadruplet_loss_kernel(margin1=2.0, margin2=1.0, *, tile_b=None,
                                num_shards=None, buffer_count=None):
    """Returns callable(anchor, positive, negative1, negative2) -> scalar loss."""
    m1 = float(margin1)
    m2 = float(margin2)

    def quadruplet_loss(anchor, positive, negative1, negative2):
        B, D = anchor.shape
        itemsize = jnp.dtype(anchor.dtype).itemsize
        vmem_phys, n_tc = _tpu_hw_info()

        ns_req = num_shards if num_shards is not None else n_tc

        if tile_b is not None:
            TB = min(int(tile_b), B)
            if TB < B:
                align = max(8, 32 // max(itemsize, 1))
                TB = max(align, (TB // align) * align)
        else:
            TB = _pick_tile_b(B, D, itemsize, vmem_phys, ns_req)

        total_tiles = pl.cdiv(B, TB)
        ns = max(1, min(ns_req, total_tiles))
        tiles_per_shard = pl.cdiv(total_tiles, ns)

        # <= 48 MiB on v7x (64 MiB physical), <= 64 MiB on v5e/v6e (128 MiB).
        vmem_limit = min(64 * 1024 * 1024, (3 * vmem_phys) // 4)

        # TODO(synk): for very large D (> ~64K) tile D as a second 'arbitrary'
        # grid axis with per-row partial-sum scratch instead of one (TB, D) block.

        def kernel(a_ref, p_ref, n1_ref, n2_ref, o_ref):
            c = pl.program_id(0)   # shard ('parallel' -> one per TensorCore)
            i = pl.program_id(1)   # batch tile within shard ('arbitrary')

            @pl.when(i == 0)
            def _init():
                o_ref[...] = jnp.zeros_like(o_ref)

            # Cast BEFORE subtracting so bf16/fp16 inputs match an f32
            # reference; a no-op for f32 inputs.  Squares/sums stay in f32.
            a = a_ref[...].astype(jnp.float32)
            p = p_ref[...].astype(jnp.float32)
            n1 = n1_ref[...].astype(jnp.float32)
            n2 = n2_ref[...].astype(jnp.float32)

            dp = a - p
            dn = a - n1
            db = n1 - n2

            sq_pos = dp * dp
            # Two fused cross-lane reductions instead of three (reuse (a-p)^2).
            s1 = jnp.sum(sq_pos - dn * dn, axis=1, keepdims=True)   # (TB, 1)
            s2 = jnp.sum(sq_pos - db * db, axis=1, keepdims=True)   # (TB, 1)
            loss = jnp.maximum(m1 + s1, 0.0) + jnp.maximum(m2 + s2, 0.0)

            tile_start = (c * tiles_per_shard + i) * TB

            # Interior tiles: plain accumulate, no mask work at all.
            @pl.when(tile_start + TB <= B)
            def _acc_full():
                o_ref[...] += jnp.sum(loss)

            # Overhanging / clamped-duplicate tiles: mask rows past B.
            @pl.when(tile_start + TB > B)
            def _acc_masked():
                row = jax.lax.broadcasted_iota(jnp.int32, loss.shape, 0)
                valid = (tile_start + row) < B
                o_ref[...] += jnp.sum(jnp.where(valid, loss, 0.0))

        def in_map(c, i):
            # Clamp so out-of-range grid steps re-read a valid tile (their
            # contribution is masked to zero); TB selection tries to make
            # total_tiles % ns == 0 so this clamp is normally a no-op.
            return (jnp.minimum(c * tiles_per_shard + i, total_tiles - 1), 0)

        spec_kwargs = {}
        if buffer_count is not None and buffer_count != 2:
            spec_kwargs["pipeline_mode"] = pl.Buffered(buffer_count)
        in_spec = pl.BlockSpec((TB, D), in_map, **spec_kwargs)
        # (8, 128)-aligned per-shard accumulator block; only [c, 0, 0] is read.
        out_spec = pl.BlockSpec((1, 8, 128), lambda c, i: (c, 0, 0))

        partial = pl.pallas_call(
            kernel,
            out_shape=jax.ShapeDtypeStruct((ns, 8, 128), jnp.float32),
            grid=(ns, tiles_per_shard),
            in_specs=[in_spec, in_spec, in_spec, in_spec],
            out_specs=out_spec,
            compiler_params=pltpu.CompilerParams(
                # TODO(synk): on v7x confirm via xprof that both shards land on
                # the two TensorCores; if not, switch this axis to
                # pltpu.CORE_PARALLEL (or a core_map split).
                dimension_semantics=("parallel", "arbitrary"),
                vmem_limit_bytes=vmem_limit,
            ),
        )(anchor, positive, negative1, negative2)

        # Final reduce over shards + mean scale (tiny, stays in XLA).
        return jnp.sum(partial[:, 0, 0]) / jnp.float32(B)

    return quadruplet_loss


def quadruplet_loss_ref(anchor, positive, negative1, negative2,
                        margin1=2.0, margin2=1.0):
    a = anchor.astype(jnp.float32)
    p = positive.astype(jnp.float32)
    n1 = negative1.astype(jnp.float32)
    n2 = negative2.astype(jnp.float32)
    d_pos = jnp.sum((a - p) ** 2, axis=1)
    d_neg = jnp.sum((a - n1) ** 2, axis=1)
    d_neg_b = jnp.sum((n1 - n2) ** 2, axis=1)
    loss = (jax.nn.relu(margin1 + d_pos - d_neg)
            + jax.nn.relu(margin2 + d_pos - d_neg_b))
    return jnp.mean(loss)


if __name__ == "__main__":
    key = jax.random.PRNGKey(0)
    k_a, k_p, k_n1, k_n2 = jax.random.split(key, 4)

    # Case 1: small batch of embeddings (single full-batch block, auto config).
    B, D = 8, 32
    anchor = jax.random.normal(k_a, (B, D), dtype=jnp.float32)
    positive = jax.random.normal(k_p, (B, D), dtype=jnp.float32)
    negative1 = jax.random.normal(k_n1, (B, D), dtype=jnp.float32)
    negative2 = jax.random.normal(k_n2, (B, D), dtype=jnp.float32)

    loss_fn = make_quadruplet_loss_kernel(margin1=2.0, margin2=1.0)
    loss = loss_fn(anchor, positive, negative1, negative2)
    jax.block_until_ready(loss)
    ref = quadruplet_loss_ref(anchor, positive, negative1, negative2)
    assert jnp.allclose(loss, ref, rtol=1e-5, atol=1e-5), (loss, ref)

    # Case 2: tiled / masked / 2-shard accumulation path (B not a multiple of
    # the tile, more tiles than shards -> exercises the clamp + masked tile).
    B2, D2 = 20, 32
    ks = jax.random.split(jax.random.PRNGKey(1), 4)
    a2, p2, n12, n22 = (jax.random.normal(k, (B2, D2), dtype=jnp.float32) for k in ks)
    loss_fn2 = make_quadruplet_loss_kernel(margin1=2.0, margin2=1.0,
                                           tile_b=8, num_shards=2)
    loss2 = loss_fn2(a2, p2, n12, n22)
    jax.block_until_ready(loss2)
    ref2 = quadruplet_loss_ref(a2, p2, n12, n22)
    assert jnp.allclose(loss2, ref2, rtol=1e-5, atol=1e-5), (loss2, ref2)

    # Case 3: bf16 input streaming with f32 accumulate (packed-sublane tile).
    B3, D3 = 32, 64
    ks3 = jax.random.split(jax.random.PRNGKey(2), 4)
    a3, p3, n13, n23 = (jax.random.normal(k, (B3, D3), dtype=jnp.float32)
                        .astype(jnp.bfloat16) for k in ks3)
    loss_fn3 = make_quadruplet_loss_kernel(margin1=2.0, margin2=1.0,
                                           tile_b=16, num_shards=1)
    loss3 = loss_fn3(a3, p3, n13, n23)
    jax.block_until_ready(loss3)
    ref3 = quadruplet_loss_ref(a3, p3, n13, n23)
    assert jnp.allclose(loss3, ref3, rtol=1e-4, atol=1e-4), (loss3, ref3)

    print("KERNEL_OK")
</pallas_src>

<mosaic_0001>
module attributes {stable_mosaic.version = 11 : i64} {
  func.func @kernel(%arg0: i32, %arg1: i32, %arg2: memref<8x32xf32, #tpu.memory_space<vmem>>, %arg3: memref<8x32xf32, #tpu.memory_space<vmem>>, %arg4: memref<8x32xf32, #tpu.memory_space<vmem>>, %arg5: memref<8x32xf32, #tpu.memory_space<vmem>>, %arg6: memref<1x8x128xf32, #tpu.memory_space<vmem>>) attributes {dimension_semantics = [#tpu.dimension_semantics<parallel>, #tpu.dimension_semantics<arbitrary>], iteration_bounds = array<i64: 1, 1>, scalar_prefetch = 0 : i64, scratch_operands = 0 : i64, tpu.core_type = #tpu.core_type<tc>, window_params = [{transform_indices = @transform_0, window_bounds = array<i64: 8, 32>}, {transform_indices = @transform_1, window_bounds = array<i64: 8, 32>}, {transform_indices = @transform_2, window_bounds = array<i64: 8, 32>}, {transform_indices = @transform_3, window_bounds = array<i64: 8, 32>}, {transform_indices = @transform_4, window_bounds = array<i64: 1, 8, 128>}]} {
    %c0_i32 = arith.constant 0 : i32
    %0 = arith.cmpi eq, %arg1, %c0_i32 : i32
    %1 = arith.extui %0 : i1 to i32
    %c0_i32_0 = arith.constant 0 : i32
    %2 = arith.cmpi ne, %1, %c0_i32_0 : i32
    scf.if %2 {
      %cst_19 = arith.constant 0.000000e+00 : f32
      %39 = vector.broadcast %cst_19 : f32 to vector<1x8x128xf32>
      %c0_20 = arith.constant 0 : index
      %c0_21 = arith.constant 0 : index
      %c0_22 = arith.constant 0 : index
      %40 = vector.load %arg6[%c0_20, %c0_21, %c0_22] : memref<1x8x128xf32, #tpu.memory_space<vmem>>, vector<1x8x128xf32>
      tpu.vector_store %arg6[%c0_20, %c0_21, %c0_22], %39 {strides = array<i32>} : memref<1x8x128xf32, #tpu.memory_space<vmem>>, vector<1x8x128xf32>,
    } else {
    }
    %c0 = arith.constant 0 : index
    %c0_1 = arith.constant 0 : index
    %3 = vector.load %arg2[%c0, %c0_1] : memref<8x32xf32, #tpu.memory_space<vmem>>, vector<8x32xf32>
    %c0_2 = arith.constant 0 : index
    %c0_3 = arith.constant 0 : index
    %4 = vector.load %arg3[%c0_2, %c0_3] : memref<8x32xf32, #tpu.memory_space<vmem>>, vector<8x32xf32>
    %c0_4 = arith.constant 0 : index
    %c0_5 = arith.constant 0 : index
    %5 = vector.load %arg4[%c0_4, %c0_5] : memref<8x32xf32, #tpu.memory_space<vmem>>, vector<8x32xf32>
    %c0_6 = arith.constant 0 : index
    %c0_7 = arith.constant 0 : index
    %6 = vector.load %arg5[%c0_6, %c0_7] : memref<8x32xf32, #tpu.memory_space<vmem>>, vector<8x32xf32>
    %7 = arith.subf %3, %4 : vector<8x32xf32>
    %8 = arith.subf %3, %5 : vector<8x32xf32>
    %9 = arith.subf %5, %6 : vector<8x32xf32>
    %10 = arith.mulf %7, %7 : vector<8x32xf32>
    %11 = arith.mulf %8, %8 : vector<8x32xf32>
    %12 = arith.subf %10, %11 : vector<8x32xf32>
    %cst = arith.constant dense<0.000000e+00> : vector<8xf32>
    %13 = vector.multi_reduction <add>, %12, %cst [1] : vector<8x32xf32> to vector<8xf32>
    %14 = vector.shape_cast %13 : vector<8xf32> to vector<8x1xf32>
    %15 = arith.mulf %9, %9 : vector<8x32xf32>
    %16 = arith.subf %10, %15 : vector<8x32xf32>
    %cst_8 = arith.constant dense<0.000000e+00> : vector<8xf32>
    %17 = vector.multi_reduction <add>, %16, %cst_8 [1] : vector<8x32xf32> to vector<8xf32>
    %18 = vector.shape_cast %17 : vector<8xf32> to vector<8x1xf32>
    %cst_9 = arith.constant 2.000000e+00 : f32
    %19 = vector.broadcast %cst_9 : f32 to vector<8x1xf32>
    %20 = arith.addf %19, %14 : vector<8x1xf32>
    %cst_10 = arith.constant 0.000000e+00 : f32
    %21 = vector.broadcast %cst_10 : f32 to vector<8x1xf32>
    %22 = arith.maximumf %20, %21 : vector<8x1xf32>
    %cst_11 = arith.constant 1.000000e+00 : f32
    %23 = vector.broadcast %cst_11 : f32 to vector<8x1xf32>
    %24 = arith.addf %23, %18 : vector<8x1xf32>
    %cst_12 = arith.constant 0.000000e+00 : f32
    %25 = vector.broadcast %cst_12 : f32 to vector<8x1xf32>
    %26 = arith.maximumf %24, %25 : vector<8x1xf32>
    %27 = arith.addf %22, %26 : vector<8x1xf32>
    %c1_i32 = arith.constant 1 : i32
    %28 = arith.muli %arg0, %c1_i32 : i32
    %29 = arith.addi %28, %arg1 : i32
    %c8_i32 = arith.constant 8 : i32
    %30 = arith.muli %29, %c8_i32 : i32
    %c8_i32_13 = arith.constant 8 : i32
    %31 = arith.addi %30, %c8_i32_13 : i32
    %c8_i32_14 = arith.constant 8 : i32
    %32 = arith.cmpi sle, %31, %c8_i32_14 : i32
    %33 = arith.extui %32 : i1 to i32
    %c0_i32_15 = arith.constant 0 : i32
    %34 = arith.cmpi ne, %33, %c0_i32_15 : i32
    scf.if %34 {
      %c0_19 = arith.constant 0 : index
      %c0_20 = arith.constant 0 : index
      %c0_21 = arith.constant 0 : index
      %39 = vector.load %arg6[%c0_19, %c0_20, %c0_21] : memref<1x8x128xf32, #tpu.memory_space<vmem>>, vector<1x8x128xf32>
      %40 = vector.shape_cast %27 : vector<8x1xf32> to vector<1x8x1xf32>
      %cst_22 = arith.constant dense<0.000000e+00> : vector<1xf32>
      %41 = vector.multi_reduction <add>, %40, %cst_22 [1, 2] : vector<1x8x1xf32> to vector<1xf32>
      %42 = vector.shape_cast %41 : vector<1xf32> to vector<1x1x1xf32>
      %43 = vector.extract %42[0, 0, 0] : f32 from vector<1x1x1xf32>
      %44 = vector.broadcast %43 : f32 to vector<1x8x128xf32>
      %45 = arith.addf %39, %44 : vector<1x8x128xf32>
      %c0_23 = arith.constant 0 : index
      %c0_24 = arith.constant 0 : index
      %c0_25 = arith.constant 0 : index
      %46 = vector.load %arg6[%c0_23, %c0_24, %c0_25] : memref<1x8x128xf32, #tpu.memory_space<vmem>>, vector<1x8x128xf32>
      tpu.vector_store %arg6[%c0_23, %c0_24, %c0_25], %45 {strides = array<i32>} : memref<1x8x128xf32, #tpu.memory_space<vmem>>, vector<1x8x128xf32>,
    } else {
    }
    %c8_i32_16 = arith.constant 8 : i32
    %35 = arith.addi %30, %c8_i32_16 : i32
    %c8_i32_17 = arith.constant 8 : i32
    %36 = arith.cmpi sgt, %35, %c8_i32_17 : i32
    %37 = arith.extui %36 : i1 to i32
    %c0_i32_18 = arith.constant 0 : i32
    %38 = arith.cmpi ne, %37, %c0_i32_18 : i32
    scf.if %38 {
      %39 = tpu.iota {dimensions = array<i32: 0>} : vector<8x1xi32>
      %40 = vector.broadcast %30 : i32 to vector<8x1xi32>
      %41 = arith.addi %40, %39 : vector<8x1xi32>
      %c8_i32_19 = arith.constant 8 : i32
      %42 = vector.broadcast %c8_i32_19 : i32 to vector<8x1xi32>
      %43 = arith.cmpi slt, %41, %42 : vector<8x1xi32>
      %c0_20 = arith.constant 0 : index
      %c0_21 = arith.constant 0 : index
      %c0_22 = arith.constant 0 : index
      %44 = vector.load %arg6[%c0_20, %c0_21, %c0_22] : memref<1x8x128xf32, #tpu.memory_space<vmem>>, vector<1x8x128xf32>
      %cst_23 = arith.constant 0.000000e+00 : f32
      %45 = vector.broadcast %cst_23 : f32 to vector<8x1xf32>
      %46 = arith.select %43, %27, %45 : vector<8x1xi1>, vector<8x1xf32>
      %47 = vector.shape_cast %46 : vector<8x1xf32> to vector<1x8x1xf32>
      %cst_24 = arith.constant dense<0.000000e+00> : vector<1xf32>
      %48 = vector.multi_reduction <add>, %47, %cst_24 [1, 2] : vector<1x8x1xf32> to vector<1xf32>
      %49 = vector.shape_cast %48 : vector<1xf32> to vector<1x1x1xf32>
      %50 = vector.extract %49[0, 0, 0] : f32 from vector<1x1x1xf32>
      %51 = vector.broadcast %50 : f32 to vector<1x8x128xf32>
      %52 = arith.addf %44, %51 : vector<1x8x128xf32>
      %c0_25 = arith.constant 0 : index
      %c0_26 = arith.constant 0 : index
      %c0_27 = arith.constant 0 : index
      %53 = vector.load %arg6[%c0_25, %c0_26, %c0_27] : memref<1x8x128xf32, #tpu.memory_space<vmem>>, vector<1x8x128xf32>
      tpu.vector_store %arg6[%c0_25, %c0_26, %c0_27], %52 {strides = array<i32>} : memref<1x8x128xf32, #tpu.memory_space<vmem>>, vector<1x8x128xf32>,
    } else {
    }
    return
  }
  func.func @transform_0(%arg0: i32, %arg1: i32) -> (i32, i32) {
    %c1_i32 = arith.constant 1 : i32
    %0 = arith.muli %arg0, %c1_i32 : i32
    %1 = arith.addi %0, %arg1 : i32
    %c0_i32 = arith.constant 0 : i32
    %2 = arith.minsi %1, %c0_i32 : i32
    %c0_i32_0 = arith.constant 0 : i32
    %c0_i32_1 = arith.constant 0 : i32
    return %2, %c0_i32_0 : i32, i32
  }
  func.func @transform_1(%arg0: i32, %arg1: i32) -> (i32, i32) {
    %c1_i32 = arith.constant 1 : i32
    %0 = arith.muli %arg0, %c1_i32 : i32
    %1 = arith.addi %0, %arg1 : i32
    %c0_i32 = arith.constant 0 : i32
    %2 = arith.minsi %1, %c0_i32 : i32
    %c0_i32_0 = arith.constant 0 : i32
    %c0_i32_1 = arith.constant 0 : i32
    return %2, %c0_i32_0 : i32, i32
  }
  func.func @transform_2(%arg0: i32, %arg1: i32) -> (i32, i32) {
    %c1_i32 = arith.constant 1 : i32
    %0 = arith.muli %arg0, %c1_i32 : i32
    %1 = arith.addi %0, %arg1 : i32
    %c0_i32 = arith.constant 0 : i32
    %2 = arith.minsi %1, %c0_i32 : i32
    %c0_i32_0 = arith.constant 0 : i32
    %c0_i32_1 = arith.constant 0 : i32
    return %2, %c0_i32_0 : i32, i32
  }
  func.func @transform_3(%arg0: i32, %arg1: i32) -> (i32, i32) {
    %c1_i32 = arith.constant 1 : i32
    %0 = arith.muli %arg0, %c1_i32 : i32
    %1 = arith.addi %0, %arg1 : i32
    %c0_i32 = arith.constant 0 : i32
    %2 = arith.minsi %1, %c0_i32 : i32
    %c0_i32_0 = arith.constant 0 : i32
    %c0_i32_1 = arith.constant 0 : i32
    return %2, %c0_i32_0 : i32, i32
  }
  func.func @transform_4(%arg0: i32, %arg1: i32) -> (i32, i32, i32) {
    %c0_i32 = arith.constant 0 : i32
    %c0_i32_0 = arith.constant 0 : i32
    %c0_i32_1 = arith.constant 0 : i32
    return %arg0, %c0_i32, %c0_i32_0 : i32, i32, i32
  }
}

</mosaic_0001>

<llo_original>
// kernel: tpu_custom_call.1
$region0: #{tpu_custom_call.1}
  #allocation0 [shape = 'u32[]', space=smem, size = 0x4, offset = 0x4, fixed_abs, tag = 'smem constant byte address 0x4 - core index']
  #allocation1 [shape = 'u32[144,128]{1,0:T(1,128)}', space=vmem, size = 0x12000, scoped, tag = 'internal scratch']
  %s0 = inlined_call_operand.hbm [shape: f32[8,32], index: 0, kind: input, shape index: {}]
  %s1 = inlined_call_operand.hbm [shape: f32[8,32], index: 1, kind: input, shape index: {}]
  %s2 = inlined_call_operand.hbm [shape: f32[8,32], index: 2, kind: input, shape index: {}]
  %s3 = inlined_call_operand.hbm [shape: f32[8,32], index: 3, kind: input, shape index: {}]
  %s4 = inlined_call_operand.hbm [shape: f32[1,8,128], index: 4, kind: output, shape index: {}]
  %s5 = sld [smem:[#allocation0]]
  $region54: #{tpu_custom_call.1} parent=0
    _
  %s7 = ssub.s32 1, %s5
  %s8 = scalar_select 0, %s7, %s5
  $region1: #{tpu_custom_call.1} parent=0
    #allocation2 [shape = 'u8[4096]{0}', space=vmem, size = 0x1000, scoped, tag = 'input window, operand 0, single buffered']
    #allocation3 [shape = 's32[1]{0}', space=sflag, size = 0x4, scoped, tag = 'scoped memory for tpu_custom_call.1']
    #allocation4 [shape = 's32[1]{0}', space=sflag, size = 0x4, scoped, tag = 'scoped memory for tpu_custom_call.1']
    #allocation5 [shape = 'u8[4096]{0}', space=vmem, size = 0x1000, scoped, tag = 'input window, operand 1, single buffered']
    #allocation6 [shape = 's32[1]{0}', space=sflag, size = 0x4, scoped, tag = 'scoped memory for tpu_custom_call.1']
    #allocation7 [shape = 'u8[4096]{0}', space=vmem, size = 0x1000, scoped, tag = 'input window, operand 2, single buffered']
    #allocation8 [shape = 'u8[4096]{0}', space=vmem, size = 0x1000, scoped, tag = 'input window, operand 3, single buffered']
    #allocation9 [shape = 's32[1]{0}', space=sflag, size = 0x4, scoped, tag = 'scoped memory for tpu_custom_call.1']
    #allocation10 [shape = 'u8[4096]{0}', space=vmem, size = 0x1000, scoped, tag = 'output window, operand 0, single buffered']
    %9 = vsyncpa [#allocation3], 0
    %10 = vsyncpa [#allocation6], 0
    %11 = vsyncpa [#allocation9], 0
    %12 = vsyncpa [#allocation4], 0
    // Predicated region
    $region2: #{tpu_custom_call.1} parent=1 // pred_check
      _
    $region3: #{tpu_custom_call.1} parent=1 // pred_check_branch
      %14 = sbr.rel (0) target = $region5
    $region4: #{tpu_custom_call.1} parent=1 // pred_region
      %s15 = sadd.s32 0, 0
      %p16 = scmp.lt.s32.totalorder %s15, 0
      %s17 = scalar_select %p16, %s15, 0
      %s19 = ssub.s32 128, 128
      %20 = vsyncadd [#allocation3], %s19
      %s21 = smul.addr %s17, 128
      %s22 = scalar_lea.hbm %s0, %s21
      %s24 = sshll.u32 [#allocation2], 4
      %s25 = int_to_ptr.vmem [resolvable:$true] %s24
      %27 = dma.hbm_to_vmem [thread:$0]  %s22, 128, %s25, [#allocation3]
    $region5: #{tpu_custom_call.1} parent=1 // pred_fallthru
      _
    // Predicated region
    $region6: #{tpu_custom_call.1} parent=1 // pred_check
      _
    $region7: #{tpu_custom_call.1} parent=1 // pred_check_branch
      %29 = sbr.rel (0) target = $region9
    $region8: #{tpu_custom_call.1} parent=1 // pred_region
      %s30 = sadd.s32 0, 0
      %p31 = scmp.lt.s32.totalorder %s30, 0
      %s32 = scalar_select %p31, %s30, 0
      %s34 = ssub.s32 128, 128
      %35 = vsyncadd [#allocation6], %s34
      %s36 = smul.addr %s32, 128
      %s37 = scalar_lea.hbm %s1, %s36
      %s39 = sshll.u32 [#allocation5], 4
      %s40 = int_to_ptr.vmem [resolvable:$true] %s39
      %42 = dma.hbm_to_vmem [thread:$0]  %s37, 128, %s40, [#allocation6]
    $region9: #{tpu_custom_call.1} parent=1 // pred_fallthru
      _
    // Predicated region
    $region10: #{tpu_custom_call.1} parent=1 // pred_check
      _
    $region11: #{tpu_custom_call.1} parent=1 // pred_check_branch
      %44 = sbr.rel (0) target = $region13
    $region12: #{tpu_custom_call.1} parent=1 // pred_region
      %s45 = sadd.s32 0, 0
      %p46 = scmp.lt.s32.totalorder %s45, 0
      %s47 = scalar_select %p46, %s45, 0
      %s49 = ssub.s32 128, 128
      %50 = vsyncadd [#allocation6], %s49
      %s51 = smul.addr %s47, 128
      %s52 = scalar_lea.hbm %s2, %s51
      %s54 = sshll.u32 [#allocation7], 4
      %s55 = int_to_ptr.vmem [resolvable:$true] %s54
      %57 = dma.hbm_to_vmem [thread:$0]  %s52, 128, %s55, [#allocation6]
    $region13: #{tpu_custom_call.1} parent=1 // pred_fallthru
      _
    // Predicated region
    $region14: #{tpu_custom_call.1} parent=1 // pred_check
      _
    $region15: #{tpu_custom_call.1} parent=1 // pred_check_branch
      %59 = sbr.rel (0) target = $region17
    $region16: #{tpu_custom_call.1} parent=1 // pred_region
      %s60 = sadd.s32 0, 0
      %p61 = scmp.lt.s32.totalorder %s60, 0
      %s62 = scalar_select %p61, %s60, 0
      %s64 = ssub.s32 128, 128
      %65 = vsyncadd [#allocation9], %s64
      %s66 = smul.addr %s62, 128
      %s67 = scalar_lea.hbm %s3, %s66
      %s69 = sshll.u32 [#allocation8], 4
      %s70 = int_to_ptr.vmem [resolvable:$true] %s69
      %72 = dma.hbm_to_vmem [thread:$0]  %s67, 128, %s70, [#allocation9]
    $region17: #{tpu_custom_call.1} parent=1 // pred_fallthru
      _
    // Predicated region
    $region18: #{tpu_custom_call.1} parent=1 // pred_check
      _
    $region19: #{tpu_custom_call.1} parent=1 // pred_check_branch
      %74 = sbr.rel (0) target = $region21
    $region20: #{tpu_custom_call.1} parent=1 // pred_region
      %75 = dma.done [#allocation3], 128
    $region21: #{tpu_custom_call.1} parent=1 // pred_fallthru
      _
    // Predicated region
    $region22: #{tpu_custom_call.1} parent=1 // pred_check
      _
    $region23: #{tpu_custom_call.1} parent=1 // pred_check_branch
      %77 = sbr.rel (0) target = $region25
    $region24: #{tpu_custom_call.1} parent=1 // pred_region
      %78 = dma.done [#allocation6], 128
    $region25: #{tpu_custom_call.1} parent=1 // pred_fallthru
      _
    // Predicated region
    $region26: #{tpu_custom_call.1} parent=1 // pred_check
      _
    $region27: #{tpu_custom_call.1} parent=1 // pred_check_branch
      %80 = sbr.rel (0) target = $region29
    $region28: #{tpu_custom_call.1} parent=1 // pred_region
      %81 = dma.done [#allocation6], 128
    $region29: #{tpu_custom_call.1} parent=1 // pred_fallthru
      _
    // Predicated region
    $region30: #{tpu_custom_call.1} parent=1 // pred_check
      _
    $region31: #{tpu_custom_call.1} parent=1 // pred_check_branch
      %83 = sbr.rel (0) target = $region33
    $region32: #{tpu_custom_call.1} parent=1 // pred_region
      %84 = dma.done [#allocation9], 128
    $region33: #{tpu_custom_call.1} parent=1 // pred_fallthru
      _
    %s85 = sadd.s32 0, 0
    %p86 = scmp.lt.s32.totalorder %s85, 0
    %s87 = scalar_select %p86, %s85, 0
    %s88 = sadd.s32 0, 0
    %p89 = scmp.lt.s32.totalorder %s88, 0
    %s90 = scalar_select %p89, %s88, 0
    %s91 = sadd.s32 0, 0
    %p92 = scmp.lt.s32.totalorder %s91, 0
    %s93 = scalar_select %p92, %s91, 0
    %s94 = sadd.s32 0, 0
    %p95 = scmp.lt.s32.totalorder %s94, 0
    %s96 = scalar_select %p95, %s94, 0
    %p97 = scmp.eq.s32.totalorder 0, 0
    // Predicated region
    $region34: #{tpu_custom_call.1} parent=1 // pred_check
      %p98 = pneg %p97
    $region35: #{tpu_custom_call.1} parent=1 // pred_check_branch
      %100 = sbr.rel (%p98) target = $region37
    $region36: #{tpu_custom_call.1} parent=1 // pred_region
      %101 = vst [vmem:[#allocation10] sm:$0xff] 0.0
    $region37: #{tpu_custom_call.1} parent=1 // pred_fallthru
      _
    %v102 = vld [vmem:[#allocation2] sm:$0xff]
    %v103 = vld [vmem:[#allocation5] sm:$0xff]
    %v104 = vld [vmem:[#allocation7] sm:$0xff]
    %v105 = vld [vmem:[#allocation8] sm:$0xff]
    %v106 = vsub.f32 %v102, %v103
    %v107 = vsub.f32 %v102, %v104
    %v108 = vsub.f32 %v104, %v105
    %v109 = vmul.f32 %v106, %v106
    %v110 = vmul.f32 %v107, %v107
    %v111 = vsub.f32 %v109, %v110
    %vm112 = vcmask 261120
    %v113 = vsel %vm112, %v111, 0.0
    %114 = vadd.xlane.f32.xlu0 %v113
    %v115 = vpop.xlane.xlu0 %114
    %v116 = vmul.f32 %v108, %v108
    %v117 = vsub.f32 %v109, %v116
    %v118 = vsel %vm112, %v117, 0.0
    %119 = vadd.xlane.f32.xlu0 %v118
    %v120 = vpop.xlane.xlu0 %119
    %v121 = vadd.f32 %v115, 2.0
    %v122 = vmax.f32 %v121, 0.0
    %v123 = vadd.f32 %v120, 1.0
    %v124 = vmax.f32 %v123, 0.0
    %v125 = vadd.f32 %v122, %v124
    %s126 = sadd.s32 0, 0
    %s127 = smul.u32 %s126, 8
    %s128 = sadd.s32 %s127, 8
    %p129 = scmp.le.s32.totalorder %s128, 8
    // Predicated region
    $region38: #{tpu_custom_call.1} parent=1 // pred_check
      %p130 = pneg %p129
    $region39: #{tpu_custom_call.1} parent=1 // pred_check_branch
      %132 = sbr.rel (%p130) target = $region41
    $region40: #{tpu_custom_call.1} parent=1 // pred_region
      %v133 = vld [vmem:[#allocation10] sm:$0xff]
      %vm134 = vcmask 7168
      %v135 = vsel %vm134, %v125, 0.0
      %136 = vadd.xlane.f32.xlu0 %v135
      %v137 = vpop.xlane.xlu0 %136
      %v138 = vrot.slane %v137, 4
      %v139 = vadd.f32 %v137, %v138
      %v140 = vrot.slane %v139, 2
      %v141 = vadd.f32 %v139, %v140
      %v142 = vrot.slane %v141, 1
      %v143 = vadd.f32 %v141, %v142
      %s144 = vtos %v143
      %v145 = vstv %s144
      %v146 = vadd.f32 %v133, %v145
      %147 = vst [vmem:[#allocation10] sm:$0xff] %v146
    $region41: #{tpu_custom_call.1} parent=1 // pred_fallthru
      _
    %p148 = scmp.gt.s32.totalorder %s128, 8
    // Predicated region
    $region42: #{tpu_custom_call.1} parent=1 // pred_check
      %p149 = pneg %p148
    $region43: #{tpu_custom_call.1} parent=1 // pred_check_branch
      %151 = sbr.rel (%p149) target = $region45
    $region44: #{tpu_custom_call.1} parent=1 // pred_region
      %v152 = vlaneseq
      %v153 = vshrl.u32 %v152, 7
      %v154 = vstv %s127
      %v155 = vadd.s32 %v154, %v153
      %vm156 = vcmp.lt.s32.totalorder %v155, 8
      %v157 = vld [vmem:[#allocation10] sm:$0xff]
      %v158 = vsel %vm156, %v125, 0.0
      %vm159 = vcmask 7168
      %v160 = vsel %vm159, %v158, 0.0
      %161 = vadd.xlane.f32.xlu0 %v160
      %v162 = vpop.xlane.xlu0 %161
      %v163 = vrot.slane %v162, 4
      %v164 = vadd.f32 %v162, %v163
      %v165 = vrot.slane %v164, 2
      %v166 = vadd.f32 %v164, %v165
      %v167 = vrot.slane %v166, 1
      %v168 = vadd.f32 %v166, %v167
      %s169 = vtos %v168
      %v170 = vstv %s169
      %v171 = vadd.f32 %v157, %v170
      %172 = vst [vmem:[#allocation10] sm:$0xff] %v171
    $region45: #{tpu_custom_call.1} parent=1 // pred_fallthru
      _
    // Predicated region
    $region46: #{tpu_custom_call.1} parent=1 // pred_check
      _
    $region47: #{tpu_custom_call.1} parent=1 // pred_check_branch
      %174 = sbr.rel (0) target = $region49
    $region48: #{tpu_custom_call.1} parent=1 // pred_region
      %s176 = ssub.s32 128, 128
      %177 = vsyncadd [#allocation4], %s176
      %s179 = sshll.u32 [#allocation10], 4
      %s180 = int_to_ptr.vmem [resolvable:$true] %s179
      %182 = dma.vmem_to_hbm [thread:$0]  %s180, 128, %s4, [#allocation4]
    $region49: #{tpu_custom_call.1} parent=1 // pred_fallthru
      _
    // Predicated region
    $region50: #{tpu_custom_call.1} parent=1 // pred_check
      _
    $region51: #{tpu_custom_call.1} parent=1 // pred_check_branch
      %184 = sbr.rel (0) target = $region53
    $region52: #{tpu_custom_call.1} parent=1 // pred_region
      %185 = dma.done [#allocation4], 128
    $region53: #{tpu_custom_call.1} parent=1 // pred_fallthru
      _
    %186 = vsyncpa [#allocation3], 1
    %187 = vsyncpa [#allocation6], 1
    %188 = vsyncpa [#allocation9], 1
    %189 = vsyncpa [#allocation4], 1

</llo_original>
